<compile_context>
chip_gen: v6e
topology: v6e:2x2x1
jax: 0.10.0
libtpu: 0.0.40
codegen_flags: <defaults>
</compile_context>

<pallas_src>
import functools

import jax
import jax.numpy as jnp
from jax.experimental import pallas as pl
from jax.experimental.pallas import tpu as pltpu


def _round_up(a, b):
    return ((a + b - 1) // b) * b


def _ceil_div(a, b):
    return (a + b - 1) // b


# ---------------------------------------------------------------------------
# Kernels
# ---------------------------------------------------------------------------

def _gcn_resident_kernel(x_ref, w_ref, b_ref, o_ref, *, compute_dtype):
    """Fast path: fused weight + bias resident in VMEM, 1-D grid over row tiles."""
    x = x_ref[...]
    if compute_dtype is not None:
        x = x.astype(compute_dtype)
    acc = jnp.dot(x, w_ref[...], preferred_element_type=jnp.float32)
    o_ref[...] = (acc + b_ref[...].astype(jnp.float32)).astype(o_ref.dtype)


def _gcn_tiled_kernel_f32out(x_ref, w_ref, b_ref, o_ref, *, compute_dtype):
    """Tiled (i, j, k) path for f32 outputs: accumulate directly into o_ref."""
    k = pl.program_id(2)

    @pl.when(k == 0)
    def _():
        o_ref[...] = jnp.zeros_like(o_ref)

    x = x_ref[...]
    if compute_dtype is not None:
        x = x.astype(compute_dtype)
    o_ref[...] += jnp.dot(x, w_ref[...], preferred_element_type=jnp.float32)

    @pl.when(k == pl.num_programs(2) - 1)
    def _():
        o_ref[...] += b_ref[...].astype(o_ref.dtype)


def _gcn_tiled_kernel_acc(x_ref, w_ref, b_ref, o_ref, acc_ref, *, compute_dtype):
    """Tiled (i, j, k) path with f32 scratch accumulator (non-f32 outputs)."""
    k = pl.program_id(2)

    @pl.when(k == 0)
    def _():
        acc_ref[...] = jnp.zeros_like(acc_ref)

    x = x_ref[...]
    if compute_dtype is not None:
        x = x.astype(compute_dtype)
    acc_ref[...] += jnp.dot(x, w_ref[...], preferred_element_type=jnp.float32)

    @pl.when(k == pl.num_programs(2) - 1)
    def _():
        o_ref[...] = (acc_ref[...] + b_ref[...].astype(jnp.float32)).astype(o_ref.dtype)


# ---------------------------------------------------------------------------
# Wrapper
# ---------------------------------------------------------------------------

def graph_convolution(x, weight, bias, adj=None, *,
                      compute_dtype=None, force_tiled=False):
    """Pallas TPU implementation of GraphConvolution.forward.

    x:      [N, F_in]      node features
    weight: [F_in, F_out]
    bias:   [F_out]
    adj:    optional [F_in, F_in]
    compute_dtype: optionally run the MXU in e.g. bf16 (x cast in-kernel,
                   weight cast once in the wrapper); accumulation stays f32.
    force_tiled:   force the (i, j, k) fallback path (used for test coverage).
    """
    N, f_in = x.shape
    f_in_w, f_out = weight.shape
    assert f_in == f_in_w
    out_dtype = x.dtype

    # Algebraic fusion: (x @ adj) @ W == x @ (adj @ W).  One-time F_in^2*F_out
    # cost instead of re-doing x @ adj per row tile (a win whenever N > F_out,
    # the normal GCN regime).  Reassociates the reduction (last-bit drift ok).
    if adj is not None:
        w_eff = jnp.dot(adj.astype(jnp.float32), weight.astype(jnp.float32),
                        preferred_element_type=jnp.float32).astype(weight.dtype)
    else:
        w_eff = weight

    w_dtype = compute_dtype if compute_dtype is not None else w_eff.dtype
    F_p = _round_up(f_out, 128)          # lane-dense output columns

    # Only the SMALL arrays get padded (weight / bias); x and the output stay
    # un-padded on HBM — Pallas masks the ragged edge row tile.
    if F_p != f_out:
        w_eff = jnp.pad(w_eff, ((0, 0), (0, F_p - f_out)))
        b_p = jnp.pad(bias, (0, F_p - f_out)).reshape(1, F_p)
    else:
        b_p = bias.reshape(1, F_p)
    if w_eff.dtype != w_dtype:
        w_eff = w_eff.astype(w_dtype)

    x_size = jnp.dtype(x.dtype).itemsize
    w_size = jnp.dtype(w_dtype).itemsize
    o_size = jnp.dtype(out_dtype).itemsize

    # Generation-aware VMEM budget (v5e/v6e: 128 MiB, v7x: 64 MiB per TC).
    try:
        vmem_cap = int(getattr(pltpu.get_tpu_info(), "vmem_capacity_bytes",
                               64 * 1024 * 1024))
    except Exception:
        vmem_cap = 64 * 1024 * 1024
    vmem_limit = min((vmem_cap * 3) // 4, 96 * 1024 * 1024)
    budget = vmem_limit - 4 * 1024 * 1024

    cost = pl.CostEstimate(
        flops=2 * N * f_in * F_p,
        transcendentals=0,
        bytes_accessed=(N * f_in * x_size + f_in * F_p * w_size
                        + F_p * 4 + N * F_p * o_size),
    )

    n_rows_p8 = _round_up(max(N, 1), 8)
    w_bytes = f_in * F_p * w_size

    # =======================================================================
    # FAST PATH: fused weight resident in VMEM, 1-D grid over row tiles.
    # HBM traffic ~= read x once + read W' once + write out once.
    # =======================================================================
    use_fast = (not force_tiled) and (w_bytes <= 16 * 1024 * 1024)
    if use_fast:
        per_row = 2 * (f_in * x_size + F_p * o_size)   # dbl-buffered x + out
        tm = min(512, n_rows_p8)
        while tm > 8 and (w_bytes + per_row * tm) > budget:
            tm = max(8, _round_up(tm // 2, 8))
        use_fast = (w_bytes + per_row * tm) <= budget

    if use_fast:
        # Keep >=2 row tiles when possible so both v7x TensorCores get work.
        if _ceil_div(N, tm) < 2 and N >= 16:
            tm = _round_up(_ceil_div(N, 2), 8)
        grid = (_ceil_div(N, tm),)

        out = pl.pallas_call(
            functools.partial(_gcn_resident_kernel, compute_dtype=compute_dtype),
            out_shape=jax.ShapeDtypeStruct((N, F_p), out_dtype),
            grid_spec=pltpu.PrefetchScalarGridSpec(
                num_scalar_prefetch=0,
                grid=grid,
                in_specs=[
                    pl.BlockSpec((tm, f_in), lambda i: (i, 0)),    # x row tile
                    pl.BlockSpec((f_in, F_p), lambda i: (0, 0)),   # W' resident
                    pl.BlockSpec((1, F_p), lambda i: (0, 0)),      # bias resident
                ],
                out_specs=pl.BlockSpec((tm, F_p), lambda i: (i, 0)),
            ),
            compiler_params=pltpu.CompilerParams(
                dimension_semantics=("parallel",),
                vmem_limit_bytes=vmem_limit,
            ),
            cost_estimate=cost,
        )(x, w_eff, b_p)
        return out if F_p == f_out else out[:, :f_out]

    # =======================================================================
    # TILED FALLBACK: (rows, out-cols, K) grid for very large fused weights.
    # =======================================================================
    big_vmem = vmem_cap >= 100 * 1024 * 1024          # v5e / v6e
    tm_cap = 1024 if big_vmem else 512
    tk_cap = 1024 if big_vmem else 512

    tk = min(_round_up(f_in, 128), tk_cap)
    tn = min(F_p, 1024)
    tm = min(tm_cap, n_rows_p8)

    def working_set(tm_, tk_, tn_):
        return (2 * tm_ * tk_ * x_size + 2 * tk_ * tn_ * w_size
                + 2 * tm_ * tn_ * o_size + tm_ * tn_ * 4 + 2 * tn_ * 4)

    while tm > 8 and working_set(tm, tk, tn) > budget:
        tm = max(8, _round_up(tm // 2, 8))
    while tk > 128 and working_set(tm, tk, tn) > budget:
        tk = max(128, _round_up(tk // 2, 128))

    if _ceil_div(N, tm) < 2 and N >= 16:
        tm = _round_up(_ceil_div(N, 2), 8)

    # Zero-pad the reduction dim only (needed for correctness of the K sum);
    # rows stay un-padded (Pallas masks the edge row tile on write).
    K_p = _round_up(f_in, tk)
    x_k = x
    w_k = w_eff
    if K_p != f_in:
        x_k = jnp.pad(x, ((0, 0), (0, K_p - f_in)))
        w_k = jnp.pad(w_eff, ((0, K_p - f_in), (0, 0)))

    grid = (_ceil_div(N, tm), _ceil_div(F_p, tn), K_p // tk)

    if out_dtype == jnp.float32:
        kernel = functools.partial(_gcn_tiled_kernel_f32out,
                                   compute_dtype=compute_dtype)
        scratch = []
    else:
        kernel = functools.partial(_gcn_tiled_kernel_acc,
                                   compute_dtype=compute_dtype)
        scratch = [pltpu.VMEM((tm, tn), jnp.float32)]

    out = pl.pallas_call(
        kernel,
        out_shape=jax.ShapeDtypeStruct((N, F_p), out_dtype),
        grid_spec=pltpu.PrefetchScalarGridSpec(
            num_scalar_prefetch=0,
            grid=grid,
            in_specs=[
                pl.BlockSpec((tm, tk), lambda i, j, k: (i, k)),   # x tile
                pl.BlockSpec((tk, tn), lambda i, j, k: (k, j)),   # fused weight
                pl.BlockSpec((1, tn), lambda i, j, k: (0, j)),    # bias slab
            ],
            out_specs=pl.BlockSpec((tm, tn), lambda i, j, k: (i, j)),
            scratch_shapes=scratch,
        ),
        compiler_params=pltpu.CompilerParams(
            dimension_semantics=("parallel", "parallel", "arbitrary"),
            vmem_limit_bytes=vmem_limit,
        ),
        cost_estimate=cost,
    )(x_k, w_k, b_p)
    return out if F_p == f_out else out[:, :f_out]


def init_params(key, in_features, out_features):
    """nn.init.kaiming_uniform_ (a=0) on a [in, out] tensor: fan_in = dim 1."""
    bound = jnp.sqrt(6.0 / out_features)
    weight = jax.random.uniform(
        key, (in_features, out_features), dtype=jnp.float32,
        minval=-bound, maxval=bound)
    bias = jnp.zeros((out_features,), dtype=jnp.float32)   # nn.init.zeros_
    return weight, bias


if __name__ == "__main__":
    key = jax.random.PRNGKey(0)
    k_x, k_adj, k_w, k_x2, k_adj2, k_w2 = jax.random.split(key, 6)

    # --- case 1: small demo shapes (fast weight-resident path) --------------
    N, F_IN, F_OUT = 32, 16, 32
    x = jax.random.normal(k_x, (N, F_IN), dtype=jnp.float32)
    adj = jax.random.normal(k_adj, (F_IN, F_IN), dtype=jnp.float32)
    weight, bias = init_params(k_w, F_IN, F_OUT)

    out = jax.block_until_ready(graph_convolution(x, weight, bias, adj=adj))
    out_no_adj = jax.block_until_ready(graph_convolution(x, weight, bias))

    ref = (x @ adj) @ weight + bias
    ref_no_adj = x @ weight + bias
    assert out.shape == (N, F_OUT) and out.dtype == jnp.float32
    assert jnp.allclose(out, ref, atol=1e-4, rtol=1e-4)
    assert jnp.allclose(out_no_adj, ref_no_adj, atol=1e-4, rtol=1e-4)

    # --- case 2: awkward shapes (not multiples of 8/128) — edge masking -----
    N2, F_IN2, F_OUT2 = 50, 40, 24
    x2 = jax.random.normal(k_x2, (N2, F_IN2), dtype=jnp.float32)
    adj2 = jax.random.normal(k_adj2, (F_IN2, F_IN2), dtype=jnp.float32)
    weight2, bias2 = init_params(k_w2, F_IN2, F_OUT2)

    out2 = jax.block_until_ready(graph_convolution(x2, weight2, bias2, adj=adj2))
    ref2 = (x2 @ adj2) @ weight2 + bias2
    assert out2.shape == (N2, F_OUT2)
    assert jnp.allclose(out2, ref2, atol=1e-4, rtol=1e-4)

    # --- case 3: force the tiled (i, j, k) fallback for coverage -------------
    out3 = jax.block_until_ready(
        graph_convolution(x2, weight2, bias2, adj=adj2, force_tiled=True))
    assert jnp.allclose(out3, ref2, atol=1e-4, rtol=1e-4)

    print("KERNEL_OK")
</pallas_src>

<mosaic_0001>
module attributes {stable_mosaic.version = 11 : i64} {
  func.func @_gcn_resident_kernel(%arg0: i32, %arg1: memref<16x16xf32, #tpu.memory_space<vmem>>, %arg2: memref<16x128xf32, #tpu.memory_space<vmem>>, %arg3: memref<1x128xf32, #tpu.memory_space<vmem>>, %arg4: memref<16x128xf32, #tpu.memory_space<vmem>>) attributes {dimension_semantics = [#tpu.dimension_semantics<parallel>], iteration_bounds = array<i64: 2>, scalar_prefetch = 0 : i64, scratch_operands = 0 : i64, tpu.core_type = #tpu.core_type<tc>, window_params = [{transform_indices = @transform_0, window_bounds = array<i64: 16, 16>}, {pipeline_mode = #tpu.pipeline_mode<synchronous>, transform_indices = @transform_1, window_bounds = array<i64: 16, 128>}, {pipeline_mode = #tpu.pipeline_mode<synchronous>, transform_indices = @transform_2, window_bounds = array<i64: 1, 128>}, {transform_indices = @transform_3, window_bounds = array<i64: 16, 128>}]} {
    %c0 = arith.constant 0 : index
    %c0_0 = arith.constant 0 : index
    %0 = vector.load %arg1[%c0, %c0_0] : memref<16x16xf32, #tpu.memory_space<vmem>>, vector<16x16xf32>
    %c0_1 = arith.constant 0 : index
    %c0_2 = arith.constant 0 : index
    %1 = vector.load %arg2[%c0_1, %c0_2] : memref<16x128xf32, #tpu.memory_space<vmem>>, vector<16x128xf32>
    %cst = arith.constant dense<0.000000e+00> : vector<16x128xf32>
    %2 = tpu.matmul %0, %1, %cst {dimension_numbers = #tpu.dot_dimension_numbers<[1], [0], [0], [1], [0, 0, 1, 1], [], []>} : vector<16x16xf32>, vector<16x128xf32>, vector<16x128xf32> -> vector<16x128xf32>
    %c0_3 = arith.constant 0 : index
    %c0_4 = arith.constant 0 : index
    %3 = vector.load %arg3[%c0_3, %c0_4] : memref<1x128xf32, #tpu.memory_space<vmem>>, vector<1x128xf32>
    %4 = vector.broadcast %3 : vector<1x128xf32> to vector<16x128xf32>
    %5 = arith.addf %2, %4 : vector<16x128xf32>
    %c0_5 = arith.constant 0 : index
    %c0_6 = arith.constant 0 : index
    %6 = vector.load %arg4[%c0_5, %c0_6] : memref<16x128xf32, #tpu.memory_space<vmem>>, vector<16x128xf32>
    tpu.vector_store %arg4[%c0_5, %c0_6], %5 {strides = array<i32>} : memref<16x128xf32, #tpu.memory_space<vmem>>, vector<16x128xf32>,
    return
  }
  func.func @transform_0(%arg0: i32) -> (i32, i32) {
    %c0_i32 = arith.constant 0 : i32
    %c0_i32_0 = arith.constant 0 : i32
    return %arg0, %c0_i32 : i32, i32
  }
  func.func @transform_1(%arg0: i32) -> (i32, i32) {
    %c0_i32 = arith.constant 0 : i32
    %c0_i32_0 = arith.constant 0 : i32
    %c0_i32_1 = arith.constant 0 : i32
    return %c0_i32, %c0_i32_0 : i32, i32
  }
  func.func @transform_2(%arg0: i32) -> (i32, i32) {
    %c0_i32 = arith.constant 0 : i32
    %c0_i32_0 = arith.constant 0 : i32
    %c0_i32_1 = arith.constant 0 : i32
    return %c0_i32, %c0_i32_0 : i32, i32
  }
  func.func @transform_3(%arg0: i32) -> (i32, i32) {
    %c0_i32 = arith.constant 0 : i32
    %c0_i32_0 = arith.constant 0 : i32
    return %arg0, %c0_i32 : i32, i32
  }
}

</mosaic_0001>

<llo_original>
// kernel: tpu_custom_call.1
$region0: #{tpu_custom_call.1}
  #allocation0 [shape = 'u32[]', space=smem, size = 0x4, offset = 0x4, fixed_abs, tag = 'smem constant byte address 0x4 - core index']
  #allocation1 [shape = 'u32[144,128]{1,0:T(1,128)}', space=vmem, size = 0x12000, scoped, tag = 'internal scratch']
  %s0 = inlined_call_operand.vmem [shape: f32[32,16], index: 0, kind: input, shape index: {}]
  %s1 = inlined_call_operand.vmem [shape: f32[16,128], index: 1, kind: input, shape index: {}]
  %s2 = inlined_call_operand.vmem [shape: f32[1,128], index: 2, kind: input, shape index: {}]
  %s3 = inlined_call_operand.hbm [shape: f32[32,128], index: 3, kind: output, shape index: {}]
  %s4 = sld [smem:[#allocation0]]
  $region45: #{tpu_custom_call.1} parent=0
    _
  %s6 = ssub.s32 1, %s4
  %s7 = scalar_select 0, %s6, %s4
  $region1: #{tpu_custom_call.1} parent=0
    #allocation2 [shape = 'u8[16384]{0}', space=vmem, size = 0x4000, scoped, tag = 'output window, operand 0']
    #allocation3 [shape = 's32[2]{0}', space=sflag, size = 0x8, scoped, tag = 'scoped memory for tpu_custom_call.1']
    %8 = vsyncpa [#allocation3], 0
    %s9 = scalar_lea.sflag [#allocation3], 1
    %10 = vsyncpa %s9, 0
    loop: start=0, step=1, limit=4
    $region2: #{tpu_custom_call.1} parent=1 // loop_pre_header
      _
    $region3: #{tpu_custom_call.1} parent=1 // loop_header
      %s12 = sphi 0, %s16
      %p13 = scmp.ge.s32.totalorder %s12, 4
      %s22 = sphi 0, %s24
      %s25 = sphi 0, %s22
      %s26 = sphi 0, %s25
      %s42 = sphi 0, %s26
      %s46 = sphi 0, %s46
      %s48 = sphi 0, %s46
      %s49 = sphi 0, %s48
      %s63 = sphi 0, %s49
      %s67 = sphi 0, %s67
      %s69 = sphi 0, %s67
      %s70 = sphi 0, %s69
      %s84 = sphi 0, %s70
      %s90 = sphi 0, %s92
      %s93 = sphi 0, %s90
      %s94 = sphi 0, %s93
      %s110 = sphi 0, %s94
    $region4: #{tpu_custom_call.1} parent=1 // loop_header_branch
      %15 = sbr.rel (%p13) target = $region8
    $region5: #{tpu_custom_call.1} parent=1 // loop_body
      %s17 = ssub.s32 %s12, 1
      %s18 = ssub.s32 %s12, 2
      %s19 = sadd.s32 %s12, 1
      %s20 = ssub.s32 %s12, %s19
      %p21 = scmp.eq.s32.totalorder %s20, 0
      %s23 = sadd.s32 %s22, 1
      %s24 = scalar_select %p21, %s22, %s23
      %p27 = pneg %p21
      %p28 = scmp.eq.s32.totalorder %s12, 1
      %p29 = por %p27, %p28
      %p30 = scmp.ne.s32.totalorder %s22, %s25
      %p31 = scmp.eq.s32.totalorder %s12, 0
      %p32 = por %p30, %p31
      %p33 = scmp.ne.s32.totalorder %s22, %s25
      %p34 = scmp.eq.s32.totalorder %s17, 1
      %p35 = por %p33, %p34
      %p36 = scmp.ne.s32.totalorder %s25, %s26
      %p37 = scmp.eq.s32.totalorder %s17, 0
      %p38 = por %p36, %p37
      %p39 = scmp.ne.s32.totalorder %s25, %s26
      %p40 = scmp.eq.s32.totalorder %s18, 1
      %p41 = por %p39, %p40
      %p43 = scmp.ne.s32.totalorder %s26, %s42
      %p44 = scmp.eq.s32.totalorder %s18, 0
      %p45 = por %p43, %p44
      %s47 = sadd.s32 %s46, 1
      %p50 = scmp.eq.s32.totalorder %s12, 1
      %p51 = scmp.ne.s32.totalorder %s46, %s48
      %p52 = scmp.eq.s32.totalorder %s12, 0
      %p53 = por %p51, %p52
      %p54 = scmp.ne.s32.totalorder %s46, %s48
      %p55 = scmp.eq.s32.totalorder %s17, 1
      %p56 = por %p54, %p55
      %p57 = scmp.ne.s32.totalorder %s48, %s49
      %p58 = scmp.eq.s32.totalorder %s17, 0
      %p59 = por %p57, %p58
      %p60 = scmp.ne.s32.totalorder %s48, %s49
      %p61 = scmp.eq.s32.totalorder %s18, 1
      %p62 = por %p60, %p61
      %p64 = scmp.ne.s32.totalorder %s49, %s63
      %p65 = scmp.eq.s32.totalorder %s18, 0
      %p66 = por %p64, %p65
      %s68 = sadd.s32 %s67, 1
      %p71 = scmp.eq.s32.totalorder %s12, 1
      %p72 = scmp.ne.s32.totalorder %s67, %s69
      %p73 = scmp.eq.s32.totalorder %s12, 0
      %p74 = por %p72, %p73
      %p75 = scmp.ne.s32.totalorder %s67, %s69
      %p76 = scmp.eq.s32.totalorder %s17, 1
      %p77 = por %p75, %p76
      %p78 = scmp.ne.s32.totalorder %s69, %s70
      %p79 = scmp.eq.s32.totalorder %s17, 0
      %p80 = por %p78, %p79
      %p81 = scmp.ne.s32.totalorder %s69, %s70
      %p82 = scmp.eq.s32.totalorder %s18, 1
      %p83 = por %p81, %p82
      %p85 = scmp.ne.s32.totalorder %s70, %s84
      %p86 = scmp.eq.s32.totalorder %s18, 0
      %p87 = por %p85, %p86
      %s88 = ssub.s32 %s12, %s19
      %p89 = scmp.eq.s32.totalorder %s88, 0
      %s91 = sadd.s32 %s90, 1
      %s92 = scalar_select %p89, %s90, %s91
      %p95 = pneg %p89
      %p96 = scmp.eq.s32.totalorder %s12, 1
      %p97 = por %p95, %p96
      %p98 = scmp.ne.s32.totalorder %s90, %s93
      %p99 = scmp.eq.s32.totalorder %s12, 0
      %p100 = por %p98, %p99
      %p101 = scmp.ne.s32.totalorder %s90, %s93
      %p102 = scmp.eq.s32.totalorder %s17, 1
      %p103 = por %p101, %p102
      %p104 = scmp.ne.s32.totalorder %s93, %s94
      %p105 = scmp.eq.s32.totalorder %s17, 0
      %p106 = por %p104, %p105
      %p107 = scmp.ne.s32.totalorder %s93, %s94
      %p108 = scmp.eq.s32.totalorder %s18, 1
      %p109 = por %p107, %p108
      %p111 = scmp.ne.s32.totalorder %s94, %s110
      %p112 = scmp.eq.s32.totalorder %s18, 0
      %p113 = por %p111, %p112
      %p114 = scmp.le.s32.totalorder 1, %s12
      %p115 = scmp.lt.s32.totalorder %s12, 3
      %p116 = pnand %p114, %p115
      %p117 = pneg %p116
      // Predicated region
      $region9: #{tpu_custom_call.1} parent=5 // pred_check
        _
      $region10: #{tpu_custom_call.1} parent=5 // pred_check_branch
        %119 = sbr.rel (%p116) target = $region12
      $region11: #{tpu_custom_call.1} parent=5 // pred_region
        %s120 = ssub.s32 %s12, 1
        // Predicated region
        $region13: #{tpu_custom_call.1} parent=11 // pred_check
          %p121 = pneg %p59
        $region14: #{tpu_custom_call.1} parent=11 // pred_check_branch
          %123 = sbr.rel (%p121) target = $region16
        $region15: #{tpu_custom_call.1} parent=11 // pred_region
          _
        $region16: #{tpu_custom_call.1} parent=11 // pred_fallthru
          _
        // Predicated region
        $region17: #{tpu_custom_call.1} parent=11 // pred_check
          %p124 = pneg %p80
        $region18: #{tpu_custom_call.1} parent=11 // pred_check_branch
          %126 = sbr.rel (%p124) target = $region20
        $region19: #{tpu_custom_call.1} parent=11 // pred_region
          _
        $region20: #{tpu_custom_call.1} parent=11 // pred_fallthru
          _
      $region12: #{tpu_custom_call.1} parent=5 // pred_fallthru
        _
      %p127 = scmp.lt.s32.totalorder %s12, 2
      // Predicated region
      $region21: #{tpu_custom_call.1} parent=5 // pred_check
        %p128 = pneg %p127
      $region22: #{tpu_custom_call.1} parent=5 // pred_check_branch
        %130 = sbr.rel (%p128) target = $region24
      $region23: #{tpu_custom_call.1} parent=5 // pred_region
        // Predicated region
        $region25: #{tpu_custom_call.1} parent=23 // pred_check
          %p131 = pneg %p32
        $region26: #{tpu_custom_call.1} parent=23 // pred_check_branch
          %133 = sbr.rel (%p131) target = $region28
        $region27: #{tpu_custom_call.1} parent=23 // pred_region
          %s134 = smul.u32 2, %s12
          %p135 = scmp.lt.s32.totalorder %s134, 3
          %s136 = scalar_select %p135, %s134, 3
          %s137 = smul.addr %s136, 8
          %s138 = scalar_lea.vmem %s0, %s137
          %s139 = smul.u32 2, %s12
        $region28: #{tpu_custom_call.1} parent=23 // pred_fallthru
          _
      $region24: #{tpu_custom_call.1} parent=5 // pred_fallthru
        _
      %p140 = scmp.le.s32.totalorder 1, %s12
      %p141 = scmp.lt.s32.totalorder %s12, 3
      %p142 = pnand %p140, %p141
      %p143 = pneg %p142
      // Predicated region
      $region29: #{tpu_custom_call.1} parent=5 // pred_check
        _
      $region30: #{tpu_custom_call.1} parent=5 // pred_check_branch
        %145 = sbr.rel (%p142) target = $region32
      $region31: #{tpu_custom_call.1} parent=5 // pred_region
        %s146 = ssub.s32 %s12, 1
        %s147 = smul.u32 2, %s17
        %p148 = scmp.lt.s32.totalorder %s147, 3
        %s149 = scalar_select %p148, %s147, 3
        %s150 = smul.addr %s149, 8
        %s151 = scalar_lea.vmem %s0, %s150
        %p152 = pneg %p38
        %p153 = pneg %p35
        %p154 = pneg %p59
        %p155 = pneg %p56
        %p156 = pneg %p80
        %p157 = pneg %p77
        %p158 = pneg %p106
        %p159 = pneg %p103
        %s160 = sand.u32 %s93, 1
        %s161 = scalar_lea.sflag [#allocation3], %s160
        %s162 = sand.u32 %s93, 1
        %s163 = smul.addr %s162, 16
        %s164 = scalar_lea.vmem [#allocation2], %s163
        %s165 = smul.u32 2, %s17
        %p166 = scmp.lt.s32.totalorder %s165, 3
        %s167 = scalar_select %p166, %s165, 3
        %s168 = smul.addr %s167, 8
        %s169 = scalar_lea.vmem %s0, %s168
        %s170 = smul.u32 2, %s17
        %s171 = smul.u32 2, %s17
        %v172 = vld [vmem:[%s169] sm:$0xff]
        %v173 = vld [vmem:[%s169 + $0x8] sm:$0xff]
        %v174 = vld [vmem:[%s1] sm:$0xff]
        %v175 = vld [vmem:[%s1 + $0x8] sm:$0xff]
        %v176 = vld [vmem:[%s2] sm:$0x1]
        %v178 = vlaneseq
        %v179 = vshrl.u32 %v178, 7
        %v180 = vsub.s32 0, %v179
        %v181 = vrot.slane %v176, %v180
        %vm183 = vcmask 130048
        %v185 = vsel %vm183, %v172, 0
        %v188 = vsel %vm183, %v173, 0
        %190 = vmatprep.subr.mxu0 0.0
        %191 = vmatpush1.msra.mxu0 0.0
        %192 = vmatprep.subr.mxu0 0.0
        %193 = vmatpush1.msra.mxu0 0.0
        %194 = vmatprep.subr.mxu0 0.0
        %195 = vmatpush1.msra.mxu0 0.0
        %196 = vmatprep.subr.mxu0 0.0
        %197 = vmatpush1.msra.mxu0 0.0
        %198 = vmatprep.subr.mxu0 0.0
        %199 = vmatpush1.msra.mxu0 0.0
        %200 = vmatprep.subr.mxu0 0.0
        %201 = vmatpush1.msra.mxu0 0.0
        %202 = vmatprep.subr.mxu0 0.0
        %203 = vmatpush1.msra.mxu0 0.0
        %204 = vmatprep.subr.mxu0 0.0
        %205 = vmatpush1.msra.mxu0 0.0
        %206 = vmatprep.subr.mxu0 0.0
        %207 = vmatpush1.msra.mxu0 0.0
        %208 = vmatprep.subr.mxu0 0.0
        %209 = vmatpush1.msra.mxu0 0.0
        %210 = vmatprep.subr.mxu0 0.0
        %211 = vmatpush1.msra.mxu0 0.0
        %212 = vmatprep.subr.mxu0 0.0
        %213 = vmatpush1.msra.mxu0 0.0
        %214 = vmatprep.subr.mxu0 0.0
        %215 = vmatpush1.msra.mxu0 0.0
        %216 = vmatprep.subr.mxu0 0.0
        %217 = vmatpush1.msra.mxu0 0.0
        %218 = vmatprep.subr.mxu0 0.0
        %219 = vmatpush1.msra.mxu0 %v175
        %220 = vmatprep.subr.mxu0 0.0
        %221 = vmatpush1.msra.mxu0 %v174
        %222 = vmatprep.subr.mxu0 0.0
        %223 = vmatpush2.msra.mxu0 0.0
        %224 = vmatprep.subr.mxu0 0.0
        %225 = vmatpush2.msra.mxu0 0.0
        %226 = vmatprep.subr.mxu0 0.0
        %227 = vmatpush2.msra.mxu0 0.0
        %228 = vmatprep.subr.mxu0 0.0
        %229 = vmatpush2.msra.mxu0 0.0
        %230 = vmatprep.subr.mxu0 0.0
        %231 = vmatpush2.msra.mxu0 0.0
        %232 = vmatprep.subr.mxu0 0.0
        %233 = vmatpush2.msra.mxu0 0.0
        %234 = vmatprep.subr.mxu0 0.0
        %235 = vmatpush2.msra.mxu0 0.0
        %236 = vmatprep.subr.mxu0 0.0
        %237 = vmatpush2.msra.mxu0 0.0
        %238 = vmatprep.subr.mxu0 0.0
        %239 = vmatpush2.msra.mxu0 0.0
        %240 = vmatprep.subr.mxu0 0.0
        %241 = vmatpush2.msra.mxu0 0.0
        %242 = vmatprep.subr.mxu0 0.0
        %243 = vmatpush2.msra.mxu0 0.0
        %244 = vmatprep.subr.mxu0 0.0
        %245 = vmatpush2.msra.mxu0 0.0
        %246 = vmatprep.subr.mxu0 0.0
        %247 = vmatpush2.msra.mxu0 0.0
        %248 = vmatprep.subr.mxu0 0.0
        %249 = vmatpush2.msra.mxu0 0.0
        %250 = vmatprep.subr.mxu0 0.0
        %251 = vmatpush2.msra.mxu0 0.0
        %252 = vmatprep.subr.mxu0 0.0
        %253 = vmatpush2.msra.mxu0 0.0
        %254 = vmatprep.mubr.f32.mxu0 0.0
        %255 = vmatmul.mubr.f32.gmra.mxu0 %v185
        %v256 = vpop.f32.mrf.mxu0
        %v257 = vadd.f32 %v181, %v256
        %v258 = vpop.f32.mrf.mxu0
        %259 = vmatprep.mubr.f32.mxu0 0.0
        %260 = vmatmul.mubr.f32.gmra.mxu0 %v188
        %v261 = vpop.f32.mrf.mxu0
        %v262 = vadd.f32 %v181, %v261
        %v263 = vpop.f32.mrf.mxu0
        %264 = vdwg.mxu0
        %265 = vst [vmem:[%s164] sm:$0xff] %v257
        %266 = vst [vmem:[%s164 + $0x8] sm:$0xff] %v262
        %s267 = sand.u32 %s93, 1
        %s268 = scalar_lea.sflag [#allocation3], %s267
        %s269 = sand.u32 %s93, 1
        %s270 = smul.addr %s269, 16
        %s271 = scalar_lea.vmem [#allocation2], %s270
        // Predicated region
        $region33: #{tpu_custom_call.1} parent=31 // pred_check
          %p272 = pneg %p103
        $region34: #{tpu_custom_call.1} parent=31 // pred_check_branch
          %274 = sbr.rel (%p272) target = $region36
        $region35: #{tpu_custom_call.1} parent=31 // pred_region
          %s275 = smul.u32 2, %s17
          %s277 = ssub.s32 256, 256
          %278 = vsyncadd %s268, %s277
          %s279 = smul.addr %s275, 128
          %s280 = scalar_lea.hbm %s3, %s279
          %s281 = sshll.u32 %s271, 4
          %s282 = int_to_ptr.vmem [resolvable:$true] %s281
          %287 = dma.vmem_to_hbm [thread:$0]  %s282, 256, %s280, %s268, 128, 128, 8
        $region36: #{tpu_custom_call.1} parent=31 // pred_fallthru
          _
      $region32: #{tpu_custom_call.1} parent=5 // pred_fallthru
        _
      %p288 = scmp.le.s32.totalorder 2, %s12
      // Predicated region
      $region37: #{tpu_custom_call.1} parent=5 // pred_check
        %p289 = pneg %p288
      $region38: #{tpu_custom_call.1} parent=5 // pred_check_branch
        %291 = sbr.rel (%p289) target = $region40
      $region39: #{tpu_custom_call.1} parent=5 // pred_region
        %s292 = ssub.s32 %s12, 2
        // Predicated region
        $region41: #{tpu_custom_call.1} parent=39 // pred_check
          %p293 = pneg %p109
        $region42: #{tpu_custom_call.1} parent=39 // pred_check_branch
          %295 = sbr.rel (%p293) target = $region44
        $region43: #{tpu_custom_call.1} parent=39 // pred_region
          %s296 = sand.u32 %s94, 1
          %s297 = scalar_lea.sflag [#allocation3], %s296
          %s298 = sand.u32 %s94, 1
          %s299 = smul.addr %s298, 16
          %s300 = scalar_lea.vmem [#allocation2], %s299
          %301 = dma.done %s297, 256
        $region44: #{tpu_custom_call.1} parent=39 // pred_fallthru
          _
      $region40: #{tpu_custom_call.1} parent=5 // pred_fallthru
        _
    $region6: #{tpu_custom_call.1} parent=1 // loop_footer
      %s16 = sadd.s32 1, %s12
    $region7: #{tpu_custom_call.1} parent=1 // loop_footer_branch
      %11 = sbr.rel target = $region3
    $region8: #{tpu_custom_call.1} parent=1 // loop_exit
      _
    %302 = vsyncpa [#allocation3], 1
    %s303 = scalar_lea.sflag [#allocation3], 1
    %304 = vsyncpa %s303, 1

</llo_original>
